<compile_context>
chip_gen: v7x
topology: tpu7x:2x2x1
jax: 0.10.0
libtpu: 0.0.40
codegen_flags: <defaults>
</compile_context>

<pallas_src>
import functools

import jax
import jax.numpy as jnp
from jax import lax
from jax.experimental import pallas as pl
from jax.experimental.pallas import tpu as pltpu


def _round_up(x, m):
    return (x + m - 1) // m * m


def _vmem_capacity_bytes():
    try:
        return int(pltpu.get_tpu_info().vmem_capacity_bytes)
    except Exception:
        return 64 * 1024 * 1024  # conservative fallback (v7x per-core VMEM)


# --------------------------------------------------------------------------- #
# Kernel
# --------------------------------------------------------------------------- #
def _head_kernel(x_ref, w1_ref, b1_ref, gamma_ref, beta_ref, w2_ref, b2_ref,
                 o_ref, *, approx_gelu):
    # ---- Linear 1 on the MXU: (bm, K) @ (K, H), f32 accumulation ----
    # x arrives in its storage dtype (f32); cast to the matmul dtype happens
    # in-register here so the wrapper never re-writes x to HBM.
    x = x_ref[...].astype(w1_ref.dtype)
    h = jnp.dot(x, w1_ref[...], preferred_element_type=jnp.float32)
    h = h + b1_ref[...]

    # ---- GELU ----
    if approx_gelu:
        # tanh approximation -> transcendental lands on the EUP slot.
        c = jnp.float32(0.7978845608028654)  # sqrt(2/pi)
        h = 0.5 * h * (1.0 + jnp.tanh(c * (h + 0.044715 * h * h * h)))
    else:
        # exact erf GELU: matches torch.nn.GELU() default bit-for-bit.
        h = 0.5 * h * (1.0 + lax.erf(h * jnp.float32(0.7071067811865476)))

    # ---- LayerNorm over hidden (lane) axis, eps=1e-5, two-pass moments ----
    mean = jnp.mean(h, axis=-1, keepdims=True)
    hc = h - mean
    var = jnp.mean(hc * hc, axis=-1, keepdims=True)
    hn = hc * lax.rsqrt(var + jnp.float32(1e-5))
    hn = hn * gamma_ref[...] + beta_ref[...]

    # ---- Dropout(0.1): identity in inference mode ----
    # TODO(synk): training-mode dropout needs pltpu.prng_seed/prng_random_bits masking.

    # ---- Linear 2 on the MXU: (bm, H) @ (H, N) ----
    out = jnp.dot(hn.astype(w2_ref.dtype), w2_ref[...],
                  preferred_element_type=jnp.float32)
    o_ref[...] = (out + b2_ref[...]).astype(o_ref.dtype)


# --------------------------------------------------------------------------- #
# One-time parameter preparation (hoisted out of the per-call path)
# --------------------------------------------------------------------------- #
def prepare_params(w1, b1, gamma, beta, w2, b2, *, matmul_dtype=jnp.bfloat16):
    """Cast / pad weights ONCE; reuse the result across all forward calls."""
    out_dim = int(w2.shape[1])
    # Lane-dense output stores only pay off for reasonably wide outputs; for a
    # narrow head (e.g. 16 classes) the masked stores of an unpadded block beat
    # 8x-inflated writes + a post-kernel slice.
    if out_dim >= 128 and out_dim % 128 != 0:
        n_pad = _round_up(out_dim, 128) - out_dim
        w2 = jnp.pad(w2, ((0, 0), (0, n_pad)))
        b2 = jnp.pad(b2, ((0, 0), (0, n_pad)))
    params = (
        w1.astype(matmul_dtype),
        jnp.asarray(b1, jnp.float32),
        jnp.asarray(gamma, jnp.float32),
        jnp.asarray(beta, jnp.float32),
        w2.astype(matmul_dtype),
        jnp.asarray(b2, jnp.float32),
    )
    return params, out_dim


# --------------------------------------------------------------------------- #
# Wrapper
# --------------------------------------------------------------------------- #
@functools.partial(
    jax.jit,
    static_argnames=("out_dim", "block_rows", "out_dtype", "approx_gelu"))
def prediction_head(x, w1, b1, gamma, beta, w2, b2, *, out_dim=None,
                    block_rows=256, out_dtype=jnp.float32, approx_gelu=False):
    """x: (B, input_dim) f32 -> (B, out_dim). Weights from prepare_params()."""
    B, K = x.shape
    H = w1.shape[1]
    N_out = w2.shape[1]                 # possibly lane-padded by prepare_params
    if out_dim is None:
        out_dim = N_out

    mm_dtype = w1.dtype
    itm = jnp.dtype(mm_dtype).itemsize
    x_itm = jnp.dtype(x.dtype).itemsize
    out_itm = jnp.dtype(out_dtype).itemsize

    # Sublane-packing granularity of the matmul dtype: 8 (f32), 16 (bf16), 32 (8-bit).
    row_mult = max(8, 32 // max(itm, 1))

    bm = min(block_rows, _round_up(B, row_mult))
    # v7x has two TensorCores: make sure the ("parallel",) row grid has >= 2
    # steps whenever the batch allows it, so both cores get work.
    if B > row_mult and _round_up(B, bm) // bm < 2:
        bm = max(row_mult, _round_up(pl.cdiv(B, 2), row_mult))
    B_pad = _round_up(B, bm)
    if B_pad != B:
        x = jnp.pad(x, ((0, B_pad - B), (0, 0)))
    grid = (B_pad // bm,)

    # Grid-invariant parameter blocks: constant index_map (never re-DMA'd),
    # single-buffered to halve their VMEM footprint.
    def param_spec(shape):
        try:
            return pl.BlockSpec(shape, lambda i: (0, 0),
                                pipeline_mode=pl.Buffered(1))
        except TypeError:  # older jax without pipeline_mode kwarg
            return pl.BlockSpec(shape, lambda i: (0, 0))

    # VMEM budget: double-buffered x/out tiles, single-buffered weights, the
    # f32 (bm, H) intermediates (h, hn) and the low-precision copy of hn.
    vmem_needed = (2 * bm * K * x_itm                    # x tile (double-buffered)
                   + 2 * bm * N_out * out_itm            # out tile (double-buffered)
                   + K * H * itm + H * N_out * itm       # weights (single-buffered)
                   + (3 * H + N_out) * 4                 # b1/gamma/beta/b2
                   + bm * H * (2 * 4 + itm))             # live intermediates
    vmem_cap = _vmem_capacity_bytes()
    # ~48 MiB headroom-safe on v7x (64 MiB), ~96 MiB usable on v5e/v6e (128 MiB).
    vmem_limit = int(min(max(32 * 1024 * 1024, 2 * vmem_needed),
                         int(0.75 * vmem_cap)))
    # TODO(synk): when K*H*itm + H*N_out*itm outgrows ~half of VMEM (v7x), add a
    # K-reduction grid axis ("arbitrary", last) with a (bm, H) f32 accumulator
    # and pl.when init/finalize instead of whole-weight residency.

    flops = 2 * B_pad * K * H + 2 * B_pad * H * N_out
    transcendentals = B_pad * (H + 1) if approx_gelu else B_pad  # tanh / rsqrt
    bytes_accessed = (B_pad * K * x_itm + K * H * itm + H * N_out * itm
                      + (3 * H + N_out) * 4 + B_pad * N_out * out_itm)

    out = pl.pallas_call(
        functools.partial(_head_kernel, approx_gelu=approx_gelu),
        out_shape=jax.ShapeDtypeStruct((B_pad, N_out), out_dtype),
        grid_spec=pltpu.PrefetchScalarGridSpec(
            num_scalar_prefetch=0,
            grid=grid,
            in_specs=[
                pl.BlockSpec((bm, K), lambda i: (i, 0)),  # x row tile
                param_spec((K, H)),                       # W1
                param_spec((1, H)),                       # b1
                param_spec((1, H)),                       # LN gamma
                param_spec((1, H)),                       # LN beta
                param_spec((H, N_out)),                   # W2
                param_spec((1, N_out)),                   # b2
            ],
            out_specs=pl.BlockSpec((bm, N_out), lambda i: (i, 0)),
        ),
        compiler_params=pltpu.CompilerParams(
            dimension_semantics=("parallel",),
            vmem_limit_bytes=vmem_limit,
        ),
        cost_estimate=pl.CostEstimate(
            flops=flops,
            transcendentals=transcendentals,
            bytes_accessed=bytes_accessed,
        ),
    )(x, w1, b1, gamma, beta, w2, b2)

    out = out[:B]
    if out_dim != N_out:
        out = out[:, :out_dim]
    return out


# --------------------------------------------------------------------------- #
# Synthetic params + pure-JAX reference
# --------------------------------------------------------------------------- #
def init_params(key, input_dim, output_dim, hidden_dim):
    """Deterministic synthetic parameter init (shapes match the nn.Module)."""
    k1, k2, k3, k4 = jax.random.split(key, 4)
    s1 = 1.0 / jnp.sqrt(jnp.float32(input_dim))
    s2 = 1.0 / jnp.sqrt(jnp.float32(hidden_dim))
    w1 = jax.random.uniform(k1, (input_dim, hidden_dim), jnp.float32, -s1, s1)
    b1 = jax.random.uniform(k2, (1, hidden_dim), jnp.float32, -s1, s1)
    gamma = jnp.ones((1, hidden_dim), jnp.float32)
    beta = jnp.zeros((1, hidden_dim), jnp.float32)
    w2 = jax.random.uniform(k3, (hidden_dim, output_dim), jnp.float32, -s2, s2)
    b2 = jax.random.uniform(k4, (1, output_dim), jnp.float32, -s2, s2)
    return w1, b1, gamma, beta, w2, b2


def reference(x, w1, b1, gamma, beta, w2, b2):
    h = x @ w1 + b1
    h = 0.5 * h * (1.0 + lax.erf(h / jnp.sqrt(2.0)))
    mean = jnp.mean(h, axis=-1, keepdims=True)
    var = jnp.mean((h - mean) ** 2, axis=-1, keepdims=True)
    hn = (h - mean) * lax.rsqrt(var + 1e-5) * gamma + beta
    return hn @ w2 + b2


if __name__ == "__main__":
    # Small-but-representative shapes: batch 256 so the row grid splits into 2
    # "parallel" steps (both v7x TensorCores busy); output_dim=16 exercises the
    # narrow-output (unpadded, masked-store) path.
    batch, input_dim, hidden_dim, output_dim = 256, 64, 256, 16

    key = jax.random.PRNGKey(0)
    kx, kp = jax.random.split(key)
    x = jax.random.normal(kx, (batch, input_dim), jnp.float32)
    raw = init_params(kp, input_dim, output_dim, hidden_dim)

    ref = reference(x, *raw)

    # bf16 MXU path; weights prepared ONCE (cast hoisted out of per-call path).
    params_bf16, out_dim = prepare_params(*raw, matmul_dtype=jnp.bfloat16)
    out = prediction_head(x, *params_bf16, out_dim=out_dim)
    out = jax.block_until_ready(out)
    assert out.shape == (batch, output_dim)
    assert jnp.allclose(out, ref, atol=3e-2, rtol=3e-2), "bf16 path mismatch"

    # Exact f32 path for tight numerical parity with the torch module.
    params_f32, out_dim = prepare_params(*raw, matmul_dtype=jnp.float32)
    out_f32 = prediction_head(x, *params_f32, out_dim=out_dim, block_rows=128)
    out_f32 = jax.block_until_ready(out_f32)
    assert jnp.allclose(out_f32, ref, atol=1e-4, rtol=1e-4), "f32 path mismatch"

    print("KERNEL_OK")
</pallas_src>

<mosaic_0001>
module attributes {stable_mosaic.version = 11 : i64} {
  func.func @_head_kernel(%arg0: i32, %arg1: memref<128x64xf32, #tpu.memory_space<vmem>>, %arg2: memref<64x256xbf16, #tpu.memory_space<vmem>>, %arg3: memref<1x256xf32, #tpu.memory_space<vmem>>, %arg4: memref<1x256xf32, #tpu.memory_space<vmem>>, %arg5: memref<1x256xf32, #tpu.memory_space<vmem>>, %arg6: memref<256x16xbf16, #tpu.memory_space<vmem>>, %arg7: memref<1x16xf32, #tpu.memory_space<vmem>>, %arg8: memref<128x16xf32, #tpu.memory_space<vmem>>) attributes {dimension_semantics = [#tpu.dimension_semantics<parallel>], iteration_bounds = array<i64: 2>, scalar_prefetch = 0 : i64, scratch_operands = 0 : i64, tpu.core_type = #tpu.core_type<tc>, window_params = [{transform_indices = @transform_0, window_bounds = array<i64: 128, 64>}, {pipeline_mode = #tpu.pipeline_mode<synchronous>, transform_indices = @transform_1, window_bounds = array<i64: 64, 256>}, {pipeline_mode = #tpu.pipeline_mode<synchronous>, transform_indices = @transform_2, window_bounds = array<i64: 1, 256>}, {pipeline_mode = #tpu.pipeline_mode<synchronous>, transform_indices = @transform_3, window_bounds = array<i64: 1, 256>}, {pipeline_mode = #tpu.pipeline_mode<synchronous>, transform_indices = @transform_4, window_bounds = array<i64: 1, 256>}, {pipeline_mode = #tpu.pipeline_mode<synchronous>, transform_indices = @transform_5, window_bounds = array<i64: 256, 16>}, {pipeline_mode = #tpu.pipeline_mode<synchronous>, transform_indices = @transform_6, window_bounds = array<i64: 1, 16>}, {transform_indices = @transform_7, window_bounds = array<i64: 128, 16>}]} {
    %c0 = arith.constant 0 : index
    %c0_0 = arith.constant 0 : index
    %0 = vector.load %arg1[%c0, %c0_0] : memref<128x64xf32, #tpu.memory_space<vmem>>, vector<128x64xf32>
    %1 = arith.truncf %0 : vector<128x64xf32> to vector<128x64xbf16>
    %c0_1 = arith.constant 0 : index
    %c0_2 = arith.constant 0 : index
    %2 = vector.load %arg2[%c0_1, %c0_2] : memref<64x256xbf16, #tpu.memory_space<vmem>>, vector<64x256xbf16>
    %cst = arith.constant dense<0.000000e+00> : vector<128x256xf32>
    %3 = tpu.matmul %1, %2, %cst {dimension_numbers = #tpu.dot_dimension_numbers<[1], [0], [0], [1], [0, 0, 1, 1], [], []>} : vector<128x64xbf16>, vector<64x256xbf16>, vector<128x256xf32> -> vector<128x256xf32>
    %c0_3 = arith.constant 0 : index
    %c0_4 = arith.constant 0 : index
    %4 = vector.load %arg3[%c0_3, %c0_4] : memref<1x256xf32, #tpu.memory_space<vmem>>, vector<1x256xf32>
    %5 = vector.broadcast %4 : vector<1x256xf32> to vector<128x256xf32>
    %6 = arith.addf %3, %5 : vector<128x256xf32>
    %cst_5 = arith.constant 5.000000e-01 : f32
    %7 = vector.broadcast %cst_5 : f32 to vector<128x256xf32>
    %8 = arith.mulf %7, %6 : vector<128x256xf32>
    %cst_6 = arith.constant 0.707106769 : f32
    %9 = vector.broadcast %cst_6 : f32 to vector<128x256xf32>
    %10 = arith.mulf %6, %9 : vector<128x256xf32>
    %11 = math.erf %10 : vector<128x256xf32>
    %cst_7 = arith.constant 1.000000e+00 : f32
    %12 = vector.broadcast %cst_7 : f32 to vector<128x256xf32>
    %13 = arith.addf %12, %11 : vector<128x256xf32>
    %14 = arith.mulf %8, %13 : vector<128x256xf32>
    %cst_8 = arith.constant dense<0.000000e+00> : vector<128xf32>
    %15 = vector.multi_reduction <add>, %14, %cst_8 [1] : vector<128x256xf32> to vector<128xf32>
    %16 = vector.shape_cast %15 : vector<128xf32> to vector<128x1xf32>
    %cst_9 = arith.constant 2.560000e+02 : f32
    %17 = vector.broadcast %cst_9 : f32 to vector<128x1xf32>
    %18 = arith.divf %16, %17 : vector<128x1xf32>
    %19 = vector.broadcast %18 : vector<128x1xf32> to vector<128x256xf32>
    %20 = arith.subf %14, %19 : vector<128x256xf32>
    %21 = arith.mulf %20, %20 : vector<128x256xf32>
    %cst_10 = arith.constant dense<0.000000e+00> : vector<128xf32>
    %22 = vector.multi_reduction <add>, %21, %cst_10 [1] : vector<128x256xf32> to vector<128xf32>
    %23 = vector.shape_cast %22 : vector<128xf32> to vector<128x1xf32>
    %cst_11 = arith.constant 2.560000e+02 : f32
    %24 = vector.broadcast %cst_11 : f32 to vector<128x1xf32>
    %25 = arith.divf %23, %24 : vector<128x1xf32>
    %cst_12 = arith.constant 9.99999974E-6 : f32
    %26 = vector.broadcast %cst_12 : f32 to vector<128x1xf32>
    %27 = arith.addf %25, %26 : vector<128x1xf32>
    %28 = math.rsqrt %27 : vector<128x1xf32>
    %29 = vector.broadcast %28 : vector<128x1xf32> to vector<128x256xf32>
    %30 = arith.mulf %20, %29 : vector<128x256xf32>
    %c0_13 = arith.constant 0 : index
    %c0_14 = arith.constant 0 : index
    %31 = vector.load %arg4[%c0_13, %c0_14] : memref<1x256xf32, #tpu.memory_space<vmem>>, vector<1x256xf32>
    %32 = vector.broadcast %31 : vector<1x256xf32> to vector<128x256xf32>
    %33 = arith.mulf %30, %32 : vector<128x256xf32>
    %c0_15 = arith.constant 0 : index
    %c0_16 = arith.constant 0 : index
    %34 = vector.load %arg5[%c0_15, %c0_16] : memref<1x256xf32, #tpu.memory_space<vmem>>, vector<1x256xf32>
    %35 = vector.broadcast %34 : vector<1x256xf32> to vector<128x256xf32>
    %36 = arith.addf %33, %35 : vector<128x256xf32>
    %37 = arith.truncf %36 : vector<128x256xf32> to vector<128x256xbf16>
    %c0_17 = arith.constant 0 : index
    %c0_18 = arith.constant 0 : index
    %38 = vector.load %arg6[%c0_17, %c0_18] : memref<256x16xbf16, #tpu.memory_space<vmem>>, vector<256x16xbf16>
    %cst_19 = arith.constant dense<0.000000e+00> : vector<128x16xf32>
    %39 = tpu.matmul %37, %38, %cst_19 {dimension_numbers = #tpu.dot_dimension_numbers<[1], [0], [0], [1], [0, 0, 1, 1], [], []>} : vector<128x256xbf16>, vector<256x16xbf16>, vector<128x16xf32> -> vector<128x16xf32>
    %c0_20 = arith.constant 0 : index
    %c0_21 = arith.constant 0 : index
    %40 = vector.load %arg7[%c0_20, %c0_21] : memref<1x16xf32, #tpu.memory_space<vmem>>, vector<1x16xf32>
    %41 = vector.broadcast %40 : vector<1x16xf32> to vector<128x16xf32>
    %42 = arith.addf %39, %41 : vector<128x16xf32>
    %c0_22 = arith.constant 0 : index
    %c0_23 = arith.constant 0 : index
    %43 = vector.load %arg8[%c0_22, %c0_23] : memref<128x16xf32, #tpu.memory_space<vmem>>, vector<128x16xf32>
    tpu.vector_store %arg8[%c0_22, %c0_23], %42 {strides = array<i32>} : memref<128x16xf32, #tpu.memory_space<vmem>>, vector<128x16xf32>,
    return
  }
  func.func @transform_0(%arg0: i32) -> (i32, i32) {
    %c0_i32 = arith.constant 0 : i32
    %c0_i32_0 = arith.constant 0 : i32
    return %arg0, %c0_i32 : i32, i32
  }
  func.func @transform_1(%arg0: i32) -> (i32, i32) {
    %c0_i32 = arith.constant 0 : i32
    %c0_i32_0 = arith.constant 0 : i32
    %c0_i32_1 = arith.constant 0 : i32
    return %c0_i32, %c0_i32_0 : i32, i32
  }
  func.func @transform_2(%arg0: i32) -> (i32, i32) {
    %c0_i32 = arith.constant 0 : i32
    %c0_i32_0 = arith.constant 0 : i32
    %c0_i32_1 = arith.constant 0 : i32
    return %c0_i32, %c0_i32_0 : i32, i32
  }
  func.func @transform_3(%arg0: i32) -> (i32, i32) {
    %c0_i32 = arith.constant 0 : i32
    %c0_i32_0 = arith.constant 0 : i32
    %c0_i32_1 = arith.constant 0 : i32
    return %c0_i32, %c0_i32_0 : i32, i32
  }
  func.func @transform_4(%arg0: i32) -> (i32, i32) {
    %c0_i32 = arith.constant 0 : i32
    %c0_i32_0 = arith.constant 0 : i32
    %c0_i32_1 = arith.constant 0 : i32
    return %c0_i32, %c0_i32_0 : i32, i32
  }
  func.func @transform_5(%arg0: i32) -> (i32, i32) {
    %c0_i32 = arith.constant 0 : i32
    %c0_i32_0 = arith.constant 0 : i32
    %c0_i32_1 = arith.constant 0 : i32
    return %c0_i32, %c0_i32_0 : i32, i32
  }
  func.func @transform_6(%arg0: i32) -> (i32, i32) {
    %c0_i32 = arith.constant 0 : i32
    %c0_i32_0 = arith.constant 0 : i32
    %c0_i32_1 = arith.constant 0 : i32
    return %c0_i32, %c0_i32_0 : i32, i32
  }
  func.func @transform_7(%arg0: i32) -> (i32, i32) {
    %c0_i32 = arith.constant 0 : i32
    %c0_i32_0 = arith.constant 0 : i32
    return %arg0, %c0_i32 : i32, i32
  }
}

</mosaic_0001>

<llo_original>
// kernel: prediction_head.1
$region0: #{prediction_head.1}
  #allocation0 [shape = 'u32[]', space=smem, size = 0x4, offset = 0x4, fixed_abs, tag = 'smem constant byte address 0x4 - core index']
  #allocation1 [shape = 'u32[144,128]{1,0:T(1,128)}', space=vmem, size = 0x12000, scoped, tag = 'internal scratch']
  %s0 = inlined_call_operand.vmem [shape: f32[256,64], index: 0, kind: input, shape index: {}]
  %s1 = inlined_call_operand.vmem [shape: bf16[64,256], index: 1, kind: input, shape index: {}]
  %s2 = inlined_call_operand.vmem [shape: f32[1,256], index: 2, kind: input, shape index: {}]
  %s3 = inlined_call_operand.vmem [shape: f32[1,256], index: 3, kind: input, shape index: {}]
  %s4 = inlined_call_operand.vmem [shape: f32[1,256], index: 4, kind: input, shape index: {}]
  %s5 = inlined_call_operand.vmem [shape: bf16[256,16], index: 5, kind: input, shape index: {}]
  %s6 = inlined_call_operand.vmem [shape: f32[1,16], index: 6, kind: input, shape index: {}]
  %s7 = inlined_call_operand.vmem [shape: f32[256,16], index: 7, kind: output, shape index: {}]
  %s8 = sld [smem:[#allocation0]]
  $region61: #{prediction_head.1} parent=0
    _
  %s10 = ssub.s32 1, %s8
  %s11 = scalar_select 0, %s10, %s8
  loop: start=0, step=1, limit=4
  $region2: #{prediction_head.1} parent=0 // loop_pre_header
    _
  $region3: #{prediction_head.1} parent=0 // loop_header
    %s13 = sphi 0, %s17
    %p14 = scmp.ge.s32.totalorder %s13, 4
    %s23 = sphi 0, %s25
    %s26 = sphi 0, %s23
    %s27 = sphi 0, %s26
    %s43 = sphi 0, %s27
    %s47 = sphi 0, %s47
    %s49 = sphi 0, %s47
    %s50 = sphi 0, %s49
    %s64 = sphi 0, %s50
    %s68 = sphi 0, %s68
    %s70 = sphi 0, %s68
    %s71 = sphi 0, %s70
    %s85 = sphi 0, %s71
    %s89 = sphi 0, %s89
    %s91 = sphi 0, %s89
    %s92 = sphi 0, %s91
    %s106 = sphi 0, %s92
    %s110 = sphi 0, %s110
    %s112 = sphi 0, %s110
    %s113 = sphi 0, %s112
    %s127 = sphi 0, %s113
    %s131 = sphi 0, %s131
    %s133 = sphi 0, %s131
    %s134 = sphi 0, %s133
    %s148 = sphi 0, %s134
    %s152 = sphi 0, %s152
    %s154 = sphi 0, %s152
    %s155 = sphi 0, %s154
    %s169 = sphi 0, %s155
    %s175 = sphi 0, %s177
    %s178 = sphi 0, %s175
    %s179 = sphi 0, %s178
    %s195 = sphi 0, %s179
  $region4: #{prediction_head.1} parent=0 // loop_header_branch
    %16 = sbr.rel (%p14) target = $region8
  $region5: #{prediction_head.1} parent=0 // loop_body
    %s18 = ssub.s32 %s13, 1
    %s19 = ssub.s32 %s13, 2
    %s20 = sadd.s32 %s13, 1
    %s21 = ssub.s32 %s13, %s20
    %p22 = scmp.eq.s32.totalorder %s21, 0
    %s24 = sadd.s32 %s23, 1
    %s25 = scalar_select %p22, %s23, %s24
    %p28 = pneg %p22
    %p29 = scmp.eq.s32.totalorder %s13, 1
    %p30 = por %p28, %p29
    %p31 = scmp.ne.s32.totalorder %s23, %s26
    %p32 = scmp.eq.s32.totalorder %s13, 0
    %p33 = por %p31, %p32
    %p34 = scmp.ne.s32.totalorder %s23, %s26
    %p35 = scmp.eq.s32.totalorder %s18, 1
    %p36 = por %p34, %p35
    %p37 = scmp.ne.s32.totalorder %s26, %s27
    %p38 = scmp.eq.s32.totalorder %s18, 0
    %p39 = por %p37, %p38
    %p40 = scmp.ne.s32.totalorder %s26, %s27
    %p41 = scmp.eq.s32.totalorder %s19, 1
    %p42 = por %p40, %p41
    %p44 = scmp.ne.s32.totalorder %s27, %s43
    %p45 = scmp.eq.s32.totalorder %s19, 0
    %p46 = por %p44, %p45
    %s48 = sadd.s32 %s47, 1
    %p51 = scmp.eq.s32.totalorder %s13, 1
    %p52 = scmp.ne.s32.totalorder %s47, %s49
    %p53 = scmp.eq.s32.totalorder %s13, 0
    %p54 = por %p52, %p53
    %p55 = scmp.ne.s32.totalorder %s47, %s49
    %p56 = scmp.eq.s32.totalorder %s18, 1
    %p57 = por %p55, %p56
    %p58 = scmp.ne.s32.totalorder %s49, %s50
    %p59 = scmp.eq.s32.totalorder %s18, 0
    %p60 = por %p58, %p59
    %p61 = scmp.ne.s32.totalorder %s49, %s50
    %p62 = scmp.eq.s32.totalorder %s19, 1
    %p63 = por %p61, %p62
    %p65 = scmp.ne.s32.totalorder %s50, %s64
    %p66 = scmp.eq.s32.totalorder %s19, 0
    %p67 = por %p65, %p66
    %s69 = sadd.s32 %s68, 1
    %p72 = scmp.eq.s32.totalorder %s13, 1
    %p73 = scmp.ne.s32.totalorder %s68, %s70
    %p74 = scmp.eq.s32.totalorder %s13, 0
    %p75 = por %p73, %p74
    %p76 = scmp.ne.s32.totalorder %s68, %s70
    %p77 = scmp.eq.s32.totalorder %s18, 1
    %p78 = por %p76, %p77
    %p79 = scmp.ne.s32.totalorder %s70, %s71
    %p80 = scmp.eq.s32.totalorder %s18, 0
    %p81 = por %p79, %p80
    %p82 = scmp.ne.s32.totalorder %s70, %s71
    %p83 = scmp.eq.s32.totalorder %s19, 1
    %p84 = por %p82, %p83
    %p86 = scmp.ne.s32.totalorder %s71, %s85
    %p87 = scmp.eq.s32.totalorder %s19, 0
    %p88 = por %p86, %p87
    %s90 = sadd.s32 %s89, 1
    %p93 = scmp.eq.s32.totalorder %s13, 1
    %p94 = scmp.ne.s32.totalorder %s89, %s91
    %p95 = scmp.eq.s32.totalorder %s13, 0
    %p96 = por %p94, %p95
    %p97 = scmp.ne.s32.totalorder %s89, %s91
    %p98 = scmp.eq.s32.totalorder %s18, 1
    %p99 = por %p97, %p98
    %p100 = scmp.ne.s32.totalorder %s91, %s92
    %p101 = scmp.eq.s32.totalorder %s18, 0
    %p102 = por %p100, %p101
    %p103 = scmp.ne.s32.totalorder %s91, %s92
    %p104 = scmp.eq.s32.totalorder %s19, 1
    %p105 = por %p103, %p104
    %p107 = scmp.ne.s32.totalorder %s92, %s106
    %p108 = scmp.eq.s32.totalorder %s19, 0
    %p109 = por %p107, %p108
    %s111 = sadd.s32 %s110, 1
    %p114 = scmp.eq.s32.totalorder %s13, 1
    %p115 = scmp.ne.s32.totalorder %s110, %s112
    %p116 = scmp.eq.s32.totalorder %s13, 0
    %p117 = por %p115, %p116
    %p118 = scmp.ne.s32.totalorder %s110, %s112
    %p119 = scmp.eq.s32.totalorder %s18, 1
    %p120 = por %p118, %p119
    %p121 = scmp.ne.s32.totalorder %s112, %s113
    %p122 = scmp.eq.s32.totalorder %s18, 0
    %p123 = por %p121, %p122
    %p124 = scmp.ne.s32.totalorder %s112, %s113
    %p125 = scmp.eq.s32.totalorder %s19, 1
    %p126 = por %p124, %p125
    %p128 = scmp.ne.s32.totalorder %s113, %s127
    %p129 = scmp.eq.s32.totalorder %s19, 0
    %p130 = por %p128, %p129
    %s132 = sadd.s32 %s131, 1
    %p135 = scmp.eq.s32.totalorder %s13, 1
    %p136 = scmp.ne.s32.totalorder %s131, %s133
    %p137 = scmp.eq.s32.totalorder %s13, 0
    %p138 = por %p136, %p137
    %p139 = scmp.ne.s32.totalorder %s131, %s133
    %p140 = scmp.eq.s32.totalorder %s18, 1
    %p141 = por %p139, %p140
    %p142 = scmp.ne.s32.totalorder %s133, %s134
    %p143 = scmp.eq.s32.totalorder %s18, 0
    %p144 = por %p142, %p143
    %p145 = scmp.ne.s32.totalorder %s133, %s134
    %p146 = scmp.eq.s32.totalorder %s19, 1
    %p147 = por %p145, %p146
    %p149 = scmp.ne.s32.totalorder %s134, %s148
    %p150 = scmp.eq.s32.totalorder %s19, 0
    %p151 = por %p149, %p150
    %s153 = sadd.s32 %s152, 1
    %p156 = scmp.eq.s32.totalorder %s13, 1
    %p157 = scmp.ne.s32.totalorder %s152, %s154
    %p158 = scmp.eq.s32.totalorder %s13, 0
    %p159 = por %p157, %p158
    %p160 = scmp.ne.s32.totalorder %s152, %s154
    %p161 = scmp.eq.s32.totalorder %s18, 1
    %p162 = por %p160, %p161
    %p163 = scmp.ne.s32.totalorder %s154, %s155
    %p164 = scmp.eq.s32.totalorder %s18, 0
    %p165 = por %p163, %p164
    %p166 = scmp.ne.s32.totalorder %s154, %s155
    %p167 = scmp.eq.s32.totalorder %s19, 1
    %p168 = por %p166, %p167
    %p170 = scmp.ne.s32.totalorder %s155, %s169
    %p171 = scmp.eq.s32.totalorder %s19, 0
    %p172 = por %p170, %p171
    %s173 = ssub.s32 %s13, %s20
    %p174 = scmp.eq.s32.totalorder %s173, 0
    %s176 = sadd.s32 %s175, 1
    %s177 = scalar_select %p174, %s175, %s176
    %p180 = pneg %p174
    %p181 = scmp.eq.s32.totalorder %s13, 1
    %p182 = por %p180, %p181
    %p183 = scmp.ne.s32.totalorder %s175, %s178
    %p184 = scmp.eq.s32.totalorder %s13, 0
    %p185 = por %p183, %p184
    %p186 = scmp.ne.s32.totalorder %s175, %s178
    %p187 = scmp.eq.s32.totalorder %s18, 1
    %p188 = por %p186, %p187
    %p189 = scmp.ne.s32.totalorder %s178, %s179
    %p190 = scmp.eq.s32.totalorder %s18, 0
    %p191 = por %p189, %p190
    %p192 = scmp.ne.s32.totalorder %s178, %s179
    %p193 = scmp.eq.s32.totalorder %s19, 1
    %p194 = por %p192, %p193
    %p196 = scmp.ne.s32.totalorder %s179, %s195
    %p197 = scmp.eq.s32.totalorder %s19, 0
    %p198 = por %p196, %p197
    %p199 = scmp.le.s32.totalorder 1, %s13
    %p200 = scmp.lt.s32.totalorder %s13, 3
    %p201 = pnand %p199, %p200
    %p202 = pneg %p201
    // Predicated region
    $region9: #{prediction_head.1} parent=5 // pred_check
      _
    $region10: #{prediction_head.1} parent=5 // pred_check_branch
      %204 = sbr.rel (%p201) target = $region12
    $region11: #{prediction_head.1} parent=5 // pred_region
      %s205 = ssub.s32 %s13, 1
      // Predicated region
      $region13: #{prediction_head.1} parent=11 // pred_check
        %p206 = pneg %p60
      $region14: #{prediction_head.1} parent=11 // pred_check_branch
        %208 = sbr.rel (%p206) target = $region16
      $region15: #{prediction_head.1} parent=11 // pred_region
        _
      $region16: #{prediction_head.1} parent=11 // pred_fallthru
        _
      // Predicated region
      $region17: #{prediction_head.1} parent=11 // pred_check
        %p209 = pneg %p81
      $region18: #{prediction_head.1} parent=11 // pred_check_branch
        %211 = sbr.rel (%p209) target = $region20
      $region19: #{prediction_head.1} parent=11 // pred_region
        _
      $region20: #{prediction_head.1} parent=11 // pred_fallthru
        _
      // Predicated region
      $region21: #{prediction_head.1} parent=11 // pred_check
        %p212 = pneg %p102
      $region22: #{prediction_head.1} parent=11 // pred_check_branch
        %214 = sbr.rel (%p212) target = $region24
      $region23: #{prediction_head.1} parent=11 // pred_region
        _
      $region24: #{prediction_head.1} parent=11 // pred_fallthru
        _
      // Predicated region
      $region25: #{prediction_head.1} parent=11 // pred_check
        %p215 = pneg %p123
      $region26: #{prediction_head.1} parent=11 // pred_check_branch
        %217 = sbr.rel (%p215) target = $region28
      $region27: #{prediction_head.1} parent=11 // pred_region
        _
      $region28: #{prediction_head.1} parent=11 // pred_fallthru
        _
      // Predicated region
      $region29: #{prediction_head.1} parent=11 // pred_check
        %p218 = pneg %p144
      $region30: #{prediction_head.1} parent=11 // pred_check_branch
        %220 = sbr.rel (%p218) target = $region32
      $region31: #{prediction_head.1} parent=11 // pred_region
        _
      $region32: #{prediction_head.1} parent=11 // pred_fallthru
        _
      // Predicated region
      $region33: #{prediction_head.1} parent=11 // pred_check
        %p221 = pneg %p165
      $region34: #{prediction_head.1} parent=11 // pred_check_branch
        %223 = sbr.rel (%p221) target = $region36
      $region35: #{prediction_head.1} parent=11 // pred_region
        _
      $region36: #{prediction_head.1} parent=11 // pred_fallthru
        _
    $region12: #{prediction_head.1} parent=5 // pred_fallthru
      _
    %p224 = scmp.lt.s32.totalorder %s13, 2
    // Predicated region
    $region37: #{prediction_head.1} parent=5 // pred_check
      %p225 = pneg %p224
    $region38: #{prediction_head.1} parent=5 // pred_check_branch
      %227 = sbr.rel (%p225) target = $region40
    $region39: #{prediction_head.1} parent=5 // pred_region
      // Predicated region
      $region41: #{prediction_head.1} parent=39 // pred_check
        %p228 = pneg %p33
      $region42: #{prediction_head.1} parent=39 // pred_check_branch
        %230 = sbr.rel (%p228) target = $region44
      $region43: #{prediction_head.1} parent=39 // pred_region
        %s231 = smul.u32 16, %s13
        %p232 = scmp.lt.s32.totalorder %s231, 31
        %s233 = scalar_select %p232, %s231, 31
        %s234 = smul.addr %s233, 8
        %s235 = scalar_lea.vmem %s0, %s234
        %s236 = smul.u32 16, %s13
      $region44: #{prediction_head.1} parent=39 // pred_fallthru
        _
    $region40: #{prediction_head.1} parent=5 // pred_fallthru
      _
    %p237 = scmp.le.s32.totalorder 1, %s13
    %p238 = scmp.lt.s32.totalorder %s13, 3
    %p239 = pnand %p237, %p238
    %p240 = pneg %p239
    // Predicated region
    $region45: #{prediction_head.1} parent=5 // pred_check
      _
    $region46: #{prediction_head.1} parent=5 // pred_check_branch
      %242 = sbr.rel (%p239) target = $region48
    $region47: #{prediction_head.1} parent=5 // pred_region
      %s243 = ssub.s32 %s13, 1
      %s244 = smul.u32 16, %s18
      %p245 = scmp.lt.s32.totalorder %s244, 31
      %s246 = scalar_select %p245, %s244, 31
      %s247 = smul.addr %s246, 8
      %s248 = scalar_lea.vmem %s0, %s247
      %p249 = pneg %p39
      %p250 = pneg %p36
      %p251 = pneg %p60
      %p252 = pneg %p57
      %p253 = pneg %p81
      %p254 = pneg %p78
      %p255 = pneg %p102
      %p256 = pneg %p99
      %p257 = pneg %p123
      %p258 = pneg %p120
      %p259 = pneg %p144
      %p260 = pneg %p141
      %p261 = pneg %p165
      %p262 = pneg %p162
      %p263 = pneg %p191
      %p264 = pneg %p188
      %s265 = smul.u32 16, %s18
      %p266 = scmp.lt.s32.totalorder %s265, 31
      %s267 = scalar_select %p266, %s265, 31
      %s268 = smul.addr %s267, 8
      %s269 = scalar_lea.vmem %s7, %s268
      %s270 = smul.u32 16, %s18
      %p271 = scmp.lt.s32.totalorder %s270, 31
      %s272 = scalar_select %p271, %s270, 31
      %s273 = smul.addr %s272, 8
      %s274 = scalar_lea.vmem %s0, %s273
      %s275 = smul.u32 16, %s18
      %s276 = smul.u32 16, %s18
      %p277 = scmp.lt.s32.totalorder %s276, 31
      %s278 = scalar_select %p277, %s276, 31
      %s279 = smul.addr %s278, 8
      %s280 = scalar_lea.vmem %s7, %s279
      %s281 = smul.u32 16, %s18
      %v283 = vld [vmem:[%s274] sm:$0xff]
      %v284 = vld [vmem:[%s274 + $0x8] sm:$0xff]
      %v285 = vld [vmem:[%s274 + $0x10] sm:$0xff]
      %v286 = vld [vmem:[%s274 + $0x18] sm:$0xff]
      %v287 = vld [vmem:[%s274 + $0x20] sm:$0xff]
      %v288 = vld [vmem:[%s274 + $0x28] sm:$0xff]
      %v289 = vld [vmem:[%s274 + $0x30] sm:$0xff]
      %v290 = vld [vmem:[%s274 + $0x38] sm:$0xff]
      %v291 = vld [vmem:[%s274 + $0x40] sm:$0xff]
      %v292 = vld [vmem:[%s274 + $0x48] sm:$0xff]
      %v293 = vld [vmem:[%s274 + $0x50] sm:$0xff]
      %v294 = vld [vmem:[%s274 + $0x58] sm:$0xff]
      %v295 = vld [vmem:[%s274 + $0x60] sm:$0xff]
      %v296 = vld [vmem:[%s274 + $0x68] sm:$0xff]
      %v297 = vld [vmem:[%s274 + $0x70] sm:$0xff]
      %v298 = vld [vmem:[%s274 + $0x78] sm:$0xff]
      %v299 = vpack.c.bf16 %v284, %v283
      %v300 = vpack.c.bf16 %v286, %v285
      %v301 = vpack.c.bf16 %v288, %v287
      %v302 = vpack.c.bf16 %v290, %v289
      %v303 = vpack.c.bf16 %v292, %v291
      %v304 = vpack.c.bf16 %v294, %v293
      %v305 = vpack.c.bf16 %v296, %v295
      %v306 = vpack.c.bf16 %v298, %v297
      %v307 = vld [vmem:[%s1] sm:$0xff]
      %v308 = vld [vmem:[%s1 + $0x8] sm:$0xff]
      %v309 = vld [vmem:[%s1 + $0x10] sm:$0xff]
      %v310 = vld [vmem:[%s1 + $0x18] sm:$0xff]
      %v311 = vld [vmem:[%s1 + $0x20] sm:$0xff]
      %v312 = vld [vmem:[%s1 + $0x28] sm:$0xff]
      %v313 = vld [vmem:[%s1 + $0x30] sm:$0xff]
      %v314 = vld [vmem:[%s1 + $0x38] sm:$0xff]
      %v315 = vld [vmem:[%s2] sm:$0x3]
      %v317 = vlaneseq
      %v318 = vshrl.u32 %v317, 7
      %v319 = vsub.s32 0, %v318
      %v320 = vrot.slane %v315, %v319
      %v321 = vlaneseq
      %v322 = vshrl.u32 %v321, 7
      %v323 = vsub.s32 1, %v322
      %v324 = vrot.slane %v315, %v323
      %v335 = vunpack.c.l.b16 %v307
      %v336 = vunpack.c.h.b16 %v307
      %v337 = vunpack.c.l.b16 %v308
      %v338 = vunpack.c.h.b16 %v308
      %v339 = vunpack.c.l.b16 %v309
      %v340 = vunpack.c.h.b16 %v309
      %v341 = vunpack.c.l.b16 %v310
      %v342 = vunpack.c.h.b16 %v310
      %v343 = vunpack.c.l.b16 %v311
      %v344 = vunpack.c.h.b16 %v311
      %v345 = vunpack.c.l.b16 %v312
      %v346 = vunpack.c.h.b16 %v312
      %v347 = vunpack.c.l.b16 %v313
      %v348 = vunpack.c.h.b16 %v313
      %v349 = vunpack.c.l.b16 %v314
      %v350 = vunpack.c.h.b16 %v314
      %v351 = vpack.c.b16 %v337, %v335
      %v352 = vpack.c.b16 %v338, %v336
      %v353 = vpack.c.b16 %v341, %v339
      %v354 = vpack.c.b16 %v342, %v340
      %v355 = vpack.c.b16 %v345, %v343
      %v356 = vpack.c.b16 %v346, %v344
      %v357 = vpack.c.b16 %v349, %v347
      %v358 = vpack.c.b16 %v350, %v348
      %vm367 = vcmask 523264
      %v369 = vsel %vm367, %v299, 0
      %v372 = vsel %vm367, %v300, 0
      %v375 = vsel %vm367, %v301, 0
      %v378 = vsel %vm367, %v302, 0
      %v381 = vsel %vm367, %v303, 0
      %v384 = vsel %vm367, %v304, 0
      %v387 = vsel %vm367, %v305, 0
      %v390 = vsel %vm367, %v306, 0
      %392 = vmatprep.subr.bf16.mxu0 %v352
      %393 = vmatpush1.bf16.msra.mxu0 %v351
      %394 = vmatprep.subr.bf16.mxu0 %v354
      %395 = vmatpush1.bf16.msra.mxu0 %v353
      %396 = vmatprep.subr.bf16.mxu0 %v356
      %397 = vmatpush1.bf16.msra.mxu0 %v355
      %398 = vmatprep.subr.bf16.mxu0 %v358
      %399 = vmatpush1.bf16.msra.mxu0 %v357
      %400 = vmatprep.subr.bf16.mxu0 0
      %401 = vmatpush1.bf16.msra.mxu0 0
      %402 = vmatprep.subr.bf16.mxu0 0
      %403 = vmatpush1.bf16.msra.mxu0 0
      %404 = vmatprep.subr.bf16.mxu0 0
      %405 = vmatpush1.bf16.msra.mxu0 0
      %406 = vmatprep.subr.bf16.mxu0 0
      %407 = vmatpush1.bf16.msra.mxu0 0
      %408 = vmatprep.subr.bf16.mxu0 0
      %409 = vmatpush1.bf16.msra.mxu0 0
      %410 = vmatprep.subr.bf16.mxu0 0
      %411 = vmatpush1.bf16.msra.mxu0 0
      %412 = vmatprep.subr.bf16.mxu0 0
      %413 = vmatpush1.bf16.msra.mxu0 0
      %414 = vmatprep.subr.bf16.mxu0 0
      %415 = vmatpush1.bf16.msra.mxu0 0
      %416 = vmatprep.subr.bf16.mxu0 0
      %417 = vmatpush1.bf16.msra.mxu0 0
      %418 = vmatprep.subr.bf16.mxu0 0
      %419 = vmatpush1.bf16.msra.mxu0 0
      %420 = vmatprep.subr.bf16.mxu0 0
      %421 = vmatpush1.bf16.msra.mxu0 0
      %422 = vmatprep.subr.bf16.mxu0 0
      %423 = vmatpush1.bf16.msra.mxu0 0
      %424 = vmatprep.mubr.bf16.mxu0 0
      %425 = vmatmul.mubr.bf16.gmra.mrb[0].mxu0 %v369
      %v426 = vpop.f32.mrb[0].mxu0
      %v427 = vadd.f32 %v320, %v426
      %v428 = vpop.f32.mrb[0].mxu0
      %v429 = vadd.f32 %v324, %v428
      %v430 = vpop.f32.mrb[0].mxu0
      %v431 = vadd.f32 %v320, %v430
      %v432 = vpop.f32.mrb[0].mxu0
      %v433 = vadd.f32 %v324, %v432
      %434 = vmatprep.mubr.bf16.mxu0 0
      %435 = vmatmul.mubr.bf16.gmra.mrb[0].mxu0 %v372
      %v436 = vpop.f32.mrb[0].mxu0
      %v437 = vadd.f32 %v320, %v436
      %v438 = vpop.f32.mrb[0].mxu0
      %v439 = vadd.f32 %v324, %v438
      %v440 = vpop.f32.mrb[0].mxu0
      %v441 = vadd.f32 %v320, %v440
      %v442 = vpop.f32.mrb[0].mxu0
      %v443 = vadd.f32 %v324, %v442
      %444 = vmatprep.mubr.bf16.mxu0 0
      %445 = vmatmul.mubr.bf16.gmra.mrb[0].mxu0 %v375
      %v446 = vpop.f32.mrb[0].mxu0
      %v447 = vadd.f32 %v320, %v446
      %v448 = vpop.f32.mrb[0].mxu0
      %v449 = vadd.f32 %v324, %v448
      %v450 = vpop.f32.mrb[0].mxu0
      %v451 = vadd.f32 %v320, %v450
      %v452 = vpop.f32.mrb[0].mxu0
      %v453 = vadd.f32 %v324, %v452
      %454 = vmatprep.mubr.bf16.mxu0 0
      %455 = vmatmul.mubr.bf16.gmra.mrb[0].mxu0 %v378
      %v456 = vpop.f32.mrb[0].mxu0
      %v457 = vadd.f32 %v320, %v456
      %v458 = vpop.f32.mrb[0].mxu0
      %v459 = vadd.f32 %v324, %v458
      %v460 = vpop.f32.mrb[0].mxu0
      %v461 = vadd.f32 %v320, %v460
      %v462 = vpop.f32.mrb[0].mxu0
      %v463 = vadd.f32 %v324, %v462
      %464 = vmatprep.mubr.bf16.mxu0 0
      %465 = vmatmul.mubr.bf16.gmra.mrb[0].mxu0 %v381
      %v466 = vpop.f32.mrb[0].mxu0
      %v467 = vadd.f32 %v320, %v466
      %v468 = vpop.f32.mrb[0].mxu0
      %v469 = vadd.f32 %v324, %v468
      %v470 = vpop.f32.mrb[0].mxu0
      %v471 = vadd.f32 %v320, %v470
      %v472 = vpop.f32.mrb[0].mxu0
      %v473 = vadd.f32 %v324, %v472
      %474 = vmatprep.mubr.bf16.mxu0 0
      %475 = vmatmul.mubr.bf16.gmra.mrb[0].mxu0 %v384
      %v476 = vpop.f32.mrb[0].mxu0
      %v477 = vadd.f32 %v320, %v476
      %v478 = vpop.f32.mrb[0].mxu0
      %v479 = vadd.f32 %v324, %v478
      %v480 = vpop.f32.mrb[0].mxu0
      %v481 = vadd.f32 %v320, %v480
      %v482 = vpop.f32.mrb[0].mxu0
      %v483 = vadd.f32 %v324, %v482
      %484 = vmatprep.mubr.bf16.mxu0 0
      %485 = vmatmul.mubr.bf16.gmra.mrb[0].mxu0 %v387
      %v486 = vpop.f32.mrb[0].mxu0
      %v487 = vadd.f32 %v320, %v486
      %v488 = vpop.f32.mrb[0].mxu0
      %v489 = vadd.f32 %v324, %v488
      %v490 = vpop.f32.mrb[0].mxu0
      %v491 = vadd.f32 %v320, %v490
      %v492 = vpop.f32.mrb[0].mxu0
      %v493 = vadd.f32 %v324, %v492
      %494 = vmatprep.mubr.bf16.mxu0 0
      %495 = vmatmul.mubr.bf16.gmra.mrb[0].mxu0 %v390
      %v496 = vpop.f32.mrb[0].mxu0
      %v497 = vadd.f32 %v320, %v496
      %v498 = vpop.f32.mrb[0].mxu0
      %v499 = vadd.f32 %v324, %v498
      %v500 = vpop.f32.mrb[0].mxu0
      %v501 = vadd.f32 %v320, %v500
      %v502 = vpop.f32.mrb[0].mxu0
      %v503 = vadd.f32 %v324, %v502
      %504 = vdwg.mxu0
      %v505 = vmul.f32 %v427, 0.5
      %v506 = vmul.f32 %v429, 0.5
      %v507 = vmul.f32 %v431, 0.5
      %v508 = vmul.f32 %v433, 0.5
      %v509 = vmul.f32 %v437, 0.5
      %v510 = vmul.f32 %v439, 0.5
      %v511 = vmul.f32 %v441, 0.5
      %v512 = vmul.f32 %v443, 0.5
      %v513 = vmul.f32 %v447, 0.5
      %v514 = vmul.f32 %v449, 0.5
      %v515 = vmul.f32 %v451, 0.5
      %v516 = vmul.f32 %v453, 0.5
      %v517 = vmul.f32 %v457, 0.5
      %v518 = vmul.f32 %v459, 0.5
      %v519 = vmul.f32 %v461, 0.5
      %v520 = vmul.f32 %v463, 0.5
      %v521 = vmul.f32 %v467, 0.5
      %v522 = vmul.f32 %v469, 0.5
      %v523 = vmul.f32 %v471, 0.5
      %v524 = vmul.f32 %v473, 0.5
      %v525 = vmul.f32 %v477, 0.5
      %v526 = vmul.f32 %v479, 0.5
      %v527 = vmul.f32 %v481, 0.5
      %v528 = vmul.f32 %v483, 0.5
      %v529 = vmul.f32 %v487, 0.5
      %v530 = vmul.f32 %v489, 0.5
      %v531 = vmul.f32 %v491, 0.5
      %v532 = vmul.f32 %v493, 0.5
      %v533 = vmul.f32 %v497, 0.5
      %v534 = vmul.f32 %v499, 0.5
      %v535 = vmul.f32 %v501, 0.5
      %v536 = vmul.f32 %v503, 0.5
      %v537 = vmul.f32 %v427, 0.70710677
      %v538 = vmul.f32 %v429, 0.70710677
      %v539 = vmul.f32 %v431, 0.70710677
      %v540 = vmul.f32 %v433, 0.70710677
      %v541 = vmul.f32 %v437, 0.70710677
      %v542 = vmul.f32 %v439, 0.70710677
      %v543 = vmul.f32 %v441, 0.70710677
      %v544 = vmul.f32 %v443, 0.70710677
      %v545 = vmul.f32 %v447, 0.70710677
      %v546 = vmul.f32 %v449, 0.70710677
      %v547 = vmul.f32 %v451, 0.70710677
      %v548 = vmul.f32 %v453, 0.70710677
      %v549 = vmul.f32 %v457, 0.70710677
      %v550 = vmul.f32 %v459, 0.70710677
      %v551 = vmul.f32 %v461, 0.70710677
      %v552 = vmul.f32 %v463, 0.70710677
      %v553 = vmul.f32 %v467, 0.70710677
      %v554 = vmul.f32 %v469, 0.70710677
      %v555 = vmul.f32 %v471, 0.70710677
      %v556 = vmul.f32 %v473, 0.70710677
      %v557 = vmul.f32 %v477, 0.70710677
      %v558 = vmul.f32 %v479, 0.70710677
      %v559 = vmul.f32 %v481, 0.70710677
      %v560 = vmul.f32 %v483, 0.70710677
      %v561 = vmul.f32 %v487, 0.70710677
      %v562 = vmul.f32 %v489, 0.70710677
      %v563 = vmul.f32 %v491, 0.70710677
      %v564 = vmul.f32 %v493, 0.70710677
      %v565 = vmul.f32 %v497, 0.70710677
      %v566 = vmul.f32 %v499, 0.70710677
      %v567 = vmul.f32 %v501, 0.70710677
      %v568 = vmul.f32 %v503, 0.70710677
      %v569 = verf.f32.pop %v537
      %v570 = verf.f32.pop %v538
      %v571 = verf.f32.pop %v539
      %v572 = verf.f32.pop %v540
      %v573 = verf.f32.pop %v541
      %v574 = verf.f32.pop %v542
      %v575 = verf.f32.pop %v543
      %v576 = verf.f32.pop %v544
      %v577 = verf.f32.pop %v545
      %v578 = verf.f32.pop %v546
      %v579 = verf.f32.pop %v547
      %v580 = verf.f32.pop %v548
      %v581 = verf.f32.pop %v549
      %v582 = verf.f32.pop %v550
      %v583 = verf.f32.pop %v551
      %v584 = verf.f32.pop %v552
      %v585 = verf.f32.pop %v553
      %v586 = verf.f32.pop %v554
      %v587 = verf.f32.pop %v555
      %v588 = verf.f32.pop %v556
      %v589 = verf.f32.pop %v557
      %v590 = verf.f32.pop %v558
      %v591 = verf.f32.pop %v559
      %v592 = verf.f32.pop %v560
      %v593 = verf.f32.pop %v561
      %v594 = verf.f32.pop %v562
      %v595 = verf.f32.pop %v563
      %v596 = verf.f32.pop %v564
      %v597 = verf.f32.pop %v565
      %v598 = verf.f32.pop %v566
      %v599 = verf.f32.pop %v567
      %v600 = verf.f32.pop %v568
      %v601 = vadd.f32 %v569, 1.0
      %v602 = vadd.f32 %v570, 1.0
      %v603 = vadd.f32 %v571, 1.0
      %v604 = vadd.f32 %v572, 1.0
      %v605 = vadd.f32 %v573, 1.0
      %v606 = vadd.f32 %v574, 1.0
      %v607 = vadd.f32 %v575, 1.0
      %v608 = vadd.f32 %v576, 1.0
      %v609 = vadd.f32 %v577, 1.0
      %v610 = vadd.f32 %v578, 1.0
      %v611 = vadd.f32 %v579, 1.0
      %v612 = vadd.f32 %v580, 1.0
      %v613 = vadd.f32 %v581, 1.0
      %v614 = vadd.f32 %v582, 1.0
      %v615 = vadd.f32 %v583, 1.0
      %v616 = vadd.f32 %v584, 1.0
      %v617 = vadd.f32 %v585, 1.0
      %v618 = vadd.f32 %v586, 1.0
      %v619 = vadd.f32 %v587, 1.0
      %v620 = vadd.f32 %v588, 1.0
      %v621 = vadd.f32 %v589, 1.0
      %v622 = vadd.f32 %v590, 1.0
      %v623 = vadd.f32 %v591, 1.0
      %v624 = vadd.f32 %v592, 1.0
      %v625 = vadd.f32 %v593, 1.0
      %v626 = vadd.f32 %v594, 1.0
      %v627 = vadd.f32 %v595, 1.0
      %v628 = vadd.f32 %v596, 1.0
      %v629 = vadd.f32 %v597, 1.0
      %v630 = vadd.f32 %v598, 1.0
      %v631 = vadd.f32 %v599, 1.0
      %v632 = vadd.f32 %v600, 1.0
      %v633 = vmul.f32 %v505, %v601
      %v634 = vmul.f32 %v506, %v602
      %v635 = vmul.f32 %v507, %v603
      %v636 = vmul.f32 %v508, %v604
      %v637 = vmul.f32 %v509, %v605
      %v638 = vmul.f32 %v510, %v606
      %v639 = vmul.f32 %v511, %v607
      %v640 = vmul.f32 %v512, %v608
      %v641 = vmul.f32 %v513, %v609
      %v642 = vmul.f32 %v514, %v610
      %v643 = vmul.f32 %v515, %v611
      %v644 = vmul.f32 %v516, %v612
      %v645 = vmul.f32 %v517, %v613
      %v646 = vmul.f32 %v518, %v614
      %v647 = vmul.f32 %v519, %v615
      %v648 = vmul.f32 %v520, %v616
      %v649 = vmul.f32 %v521, %v617
      %v650 = vmul.f32 %v522, %v618
      %v651 = vmul.f32 %v523, %v619
      %v652 = vmul.f32 %v524, %v620
      %v653 = vmul.f32 %v525, %v621
      %v654 = vmul.f32 %v526, %v622
      %v655 = vmul.f32 %v527, %v623
      %v656 = vmul.f32 %v528, %v624
      %v657 = vmul.f32 %v529, %v625
      %v658 = vmul.f32 %v530, %v626
      %v659 = vmul.f32 %v531, %v627
      %v660 = vmul.f32 %v532, %v628
      %v661 = vmul.f32 %v533, %v629
      %v662 = vmul.f32 %v534, %v630
      %v663 = vmul.f32 %v535, %v631
      %v664 = vmul.f32 %v536, %v632
      %v665 = vadd.f32 %v633, %v634
      %666 = vadd.xlane.f32.xlu0 %v665
      %v667 = vpop.xlane.xlu0 %666
      %v668 = vadd.f32 %v635, %v636
      %669 = vadd.xlane.f32.xlu0 %v668
      %v670 = vpop.xlane.xlu0 %669
      %v671 = vadd.f32 %v637, %v638
      %672 = vadd.xlane.f32.xlu0 %v671
      %v673 = vpop.xlane.xlu0 %672
      %v674 = vadd.f32 %v639, %v640
      %675 = vadd.xlane.f32.xlu0 %v674
      %v676 = vpop.xlane.xlu0 %675
      %v677 = vadd.f32 %v641, %v642
      %678 = vadd.xlane.f32.xlu0 %v677
      %v679 = vpop.xlane.xlu0 %678
      %v680 = vadd.f32 %v643, %v644
      %681 = vadd.xlane.f32.xlu0 %v680
      %v682 = vpop.xlane.xlu0 %681
      %v683 = vadd.f32 %v645, %v646
      %684 = vadd.xlane.f32.xlu0 %v683
      %v685 = vpop.xlane.xlu0 %684
      %v686 = vadd.f32 %v647, %v648
      %687 = vadd.xlane.f32.xlu0 %v686
      %v688 = vpop.xlane.xlu0 %687
      %v689 = vadd.f32 %v649, %v650
      %690 = vadd.xlane.f32.xlu0 %v689
      %v691 = vpop.xlane.xlu0 %690
      %v692 = vadd.f32 %v651, %v652
      %693 = vadd.xlane.f32.xlu0 %v692
      %v694 = vpop.xlane.xlu0 %693
      %v695 = vadd.f32 %v653, %v654
      %696 = vadd.xlane.f32.xlu0 %v695
      %v697 = vpop.xlane.xlu0 %696
      %v698 = vadd.f32 %v655, %v656
      %699 = vadd.xlane.f32.xlu0 %v698
      %v700 = vpop.xlane.xlu0 %699
      %v701 = vadd.f32 %v657, %v658
      %702 = vadd.xlane.f32.xlu0 %v701
      %v703 = vpop.xlane.xlu0 %702
      %v704 = vadd.f32 %v659, %v660
      %705 = vadd.xlane.f32.xlu0 %v704
      %v706 = vpop.xlane.xlu0 %705
      %v707 = vadd.f32 %v661, %v662
      %708 = vadd.xlane.f32.xlu0 %v707
      %v709 = vpop.xlane.xlu0 %708
      %v710 = vadd.f32 %v663, %v664
      %711 = vadd.xlane.f32.xlu0 %v710
      %v712 = vpop.xlane.xlu0 %711
      %v713 = vrcp.pop 256.0
      %v714 = vmul.f32 %v667, %v713
      %v715 = vmul.f32 %v670, %v713
      %v716 = vmul.f32 %v673, %v713
      %v717 = vmul.f32 %v676, %v713
      %v718 = vmul.f32 %v679, %v713
      %v719 = vmul.f32 %v682, %v713
      %v720 = vmul.f32 %v685, %v713
      %v721 = vmul.f32 %v688, %v713
      %v722 = vmul.f32 %v691, %v713
      %v723 = vmul.f32 %v694, %v713
      %v724 = vmul.f32 %v697, %v713
      %v725 = vmul.f32 %v700, %v713
      %v726 = vmul.f32 %v703, %v713
      %v727 = vmul.f32 %v706, %v713
      %v728 = vmul.f32 %v709, %v713
      %v729 = vmul.f32 %v712, %v713
      %v730 = vsub.f32 %v633, %v714
      %v731 = vsub.f32 %v634, %v714
      %v732 = vsub.f32 %v635, %v715
      %v733 = vsub.f32 %v636, %v715
      %v734 = vsub.f32 %v637, %v716
      %v735 = vsub.f32 %v638, %v716
      %v736 = vsub.f32 %v639, %v717
      %v737 = vsub.f32 %v640, %v717
      %v738 = vsub.f32 %v641, %v718
      %v739 = vsub.f32 %v642, %v718
      %v740 = vsub.f32 %v643, %v719
      %v741 = vsub.f32 %v644, %v719
      %v742 = vsub.f32 %v645, %v720
      %v743 = vsub.f32 %v646, %v720
      %v744 = vsub.f32 %v647, %v721
      %v745 = vsub.f32 %v648, %v721
      %v746 = vsub.f32 %v649, %v722
      %v747 = vsub.f32 %v650, %v722
      %v748 = vsub.f32 %v651, %v723
      %v749 = vsub.f32 %v652, %v723
      %v750 = vsub.f32 %v653, %v724
      %v751 = vsub.f32 %v654, %v724
      %v752 = vsub.f32 %v655, %v725
      %v753 = vsub.f32 %v656, %v725
      %v754 = vsub.f32 %v657, %v726
      %v755 = vsub.f32 %v658, %v726
      %v756 = vsub.f32 %v659, %v727
      %v757 = vsub.f32 %v660, %v727
      %v758 = vsub.f32 %v661, %v728
      %v759 = vsub.f32 %v662, %v728
      %v760 = vsub.f32 %v663, %v729
      %v761 = vsub.f32 %v664, %v729
      %v762 = vmul.f32 %v730, %v730
      %v763 = vmul.f32 %v731, %v731
      %v764 = vmul.f32 %v732, %v732
      %v765 = vmul.f32 %v733, %v733
      %v766 = vmul.f32 %v734, %v734
      %v767 = vmul.f32 %v735, %v735
      %v768 = vmul.f32 %v736, %v736
      %v769 = vmul.f32 %v737, %v737
      %v770 = vmul.f32 %v738, %v738
      %v771 = vmul.f32 %v739, %v739
      %v772 = vmul.f32 %v740, %v740
      %v773 = vmul.f32 %v741, %v741
      %v774 = vmul.f32 %v742, %v742
      %v775 = vmul.f32 %v743, %v743
      %v776 = vmul.f32 %v744, %v744
      %v777 = vmul.f32 %v745, %v745
      %v778 = vmul.f32 %v746, %v746
      %v779 = vmul.f32 %v747, %v747
      %v780 = vmul.f32 %v748, %v748
      %v781 = vmul.f32 %v749, %v749
      %v782 = vmul.f32 %v750, %v750
      %v783 = vmul.f32 %v751, %v751
      %v784 = vmul.f32 %v752, %v752
      %v785 = vmul.f32 %v753, %v753
      %v786 = vmul.f32 %v754, %v754
      %v787 = vmul.f32 %v755, %v755
      %v788 = vmul.f32 %v756, %v756
      %v789 = vmul.f32 %v757, %v757
      %v790 = vmul.f32 %v758, %v758
      %v791 = vmul.f32 %v759, %v759
      %v792 = vmul.f32 %v760, %v760
      %v793 = vmul.f32 %v761, %v761
      %v794 = vadd.f32 %v762, %v763
      %795 = vadd.xlane.f32.xlu0 %v794
      %v796 = vpop.xlane.xlu0 %795
      %v797 = vadd.f32 %v764, %v765
      %798 = vadd.xlane.f32.xlu0 %v797
      %v799 = vpop.xlane.xlu0 %798
      %v800 = vadd.f32 %v766, %v767
      %801 = vadd.xlane.f32.xlu0 %v800
      %v802 = vpop.xlane.xlu0 %801
      %v803 = vadd.f32 %v768, %v769
      %804 = vadd.xlane.f32.xlu0 %v803
      %v805 = vpop.xlane.xlu0 %804
      %v806 = vadd.f32 %v770, %v771
      %807 = vadd.xlane.f32.xlu0 %v806
      %v808 = vpop.xlane.xlu0 %807
      %v809 = vadd.f32 %v772, %v773
      %810 = vadd.xlane.f32.xlu0 %v809
      %v811 = vpop.xlane.xlu0 %810
      %v812 = vadd.f32 %v774, %v775
      %813 = vadd.xlane.f32.xlu0 %v812
      %v814 = vpop.xlane.xlu0 %813
      %v815 = vadd.f32 %v776, %v777
      %816 = vadd.xlane.f32.xlu0 %v815
      %v817 = vpop.xlane.xlu0 %816
      %v818 = vadd.f32 %v778, %v779
      %819 = vadd.xlane.f32.xlu0 %v818
      %v820 = vpop.xlane.xlu0 %819
      %v821 = vadd.f32 %v780, %v781
      %822 = vadd.xlane.f32.xlu0 %v821
      %v823 = vpop.xlane.xlu0 %822
      %v824 = vadd.f32 %v782, %v783
      %825 = vadd.xlane.f32.xlu0 %v824
      %v826 = vpop.xlane.xlu0 %825
      %v827 = vadd.f32 %v784, %v785
      %828 = vadd.xlane.f32.xlu0 %v827
      %v829 = vpop.xlane.xlu0 %828
      %v830 = vadd.f32 %v786, %v787
      %831 = vadd.xlane.f32.xlu0 %v830
      %v832 = vpop.xlane.xlu0 %831
      %v833 = vadd.f32 %v788, %v789
      %834 = vadd.xlane.f32.xlu0 %v833
      %v835 = vpop.xlane.xlu0 %834
      %v836 = vadd.f32 %v790, %v791
      %837 = vadd.xlane.f32.xlu0 %v836
      %v838 = vpop.xlane.xlu0 %837
      %v839 = vadd.f32 %v792, %v793
      %840 = vadd.xlane.f32.xlu0 %v839
      %v841 = vpop.xlane.xlu0 %840
      %v842 = vmul.f32 %v796, %v713
      %v843 = vmul.f32 %v799, %v713
      %v844 = vmul.f32 %v802, %v713
      %v845 = vmul.f32 %v805, %v713
      %v846 = vmul.f32 %v808, %v713
      %v847 = vmul.f32 %v811, %v713
      %v848 = vmul.f32 %v814, %v713
      %v849 = vmul.f32 %v817, %v713
      %v850 = vmul.f32 %v820, %v713
      %v851 = vmul.f32 %v823, %v713
      %v852 = vmul.f32 %v826, %v713
      %v853 = vmul.f32 %v829, %v713
      %v854 = vmul.f32 %v832, %v713
      %v855 = vmul.f32 %v835, %v713
      %v856 = vmul.f32 %v838, %v713
      %v857 = vmul.f32 %v841, %v713
      %v858 = vadd.f32 %v842, 1e-05
      %v859 = vadd.f32 %v843, 1e-05
      %v860 = vadd.f32 %v844, 1e-05
      %v861 = vadd.f32 %v845, 1e-05
      %v862 = vadd.f32 %v846, 1e-05
      %v863 = vadd.f32 %v847, 1e-05
      %v864 = vadd.f32 %v848, 1e-05
      %v865 = vadd.f32 %v849, 1e-05
      %v866 = vadd.f32 %v850, 1e-05
      %v867 = vadd.f32 %v851, 1e-05
      %v868 = vadd.f32 %v852, 1e-05
      %v869 = vadd.f32 %v853, 1e-05
      %v870 = vadd.f32 %v854, 1e-05
      %v871 = vadd.f32 %v855, 1e-05
      %v872 = vadd.f32 %v856, 1e-05
      %v873 = vadd.f32 %v857, 1e-05
      %v874 = vrsqrt.pop %v858
      %v875 = vrsqrt.pop %v859
      %v876 = vrsqrt.pop %v860
      %v877 = vrsqrt.pop %v861
      %v878 = vrsqrt.pop %v862
      %v879 = vrsqrt.pop %v863
      %v880 = vrsqrt.pop %v864
      %v881 = vrsqrt.pop %v865
      %v882 = vrsqrt.pop %v866
      %v883 = vrsqrt.pop %v867
      %v884 = vrsqrt.pop %v868
      %v885 = vrsqrt.pop %v869
      %v886 = vrsqrt.pop %v870
      %v887 = vrsqrt.pop %v871
      %v888 = vrsqrt.pop %v872
      %v889 = vrsqrt.pop %v873
      %v890 = vmul.f32 %v730, %v874
      %v891 = vmul.f32 %v731, %v874
      %v892 = vmul.f32 %v732, %v875
      %v893 = vmul.f32 %v733, %v875
      %v894 = vmul.f32 %v734, %v876
      %v895 = vmul.f32 %v735, %v876
      %v896 = vmul.f32 %v736, %v877
      %v897 = vmul.f32 %v737, %v877
      %v898 = vmul.f32 %v738, %v878
      %v899 = vmul.f32 %v739, %v878
      %v900 = vmul.f32 %v740, %v879
      %v901 = vmul.f32 %v741, %v879
      %v902 = vmul.f32 %v742, %v880
      %v903 = vmul.f32 %v743, %v880
      %v904 = vmul.f32 %v744, %v881
      %v905 = vmul.f32 %v745, %v881
      %v906 = vmul.f32 %v746, %v882
      %v907 = vmul.f32 %v747, %v882
      %v908 = vmul.f32 %v748, %v883
      %v909 = vmul.f32 %v749, %v883
      %v910 = vmul.f32 %v750, %v884
      %v911 = vmul.f32 %v751, %v884
      %v912 = vmul.f32 %v752, %v885
      %v913 = vmul.f32 %v753, %v885
      %v914 = vmul.f32 %v754, %v886
      %v915 = vmul.f32 %v755, %v886
      %v916 = vmul.f32 %v756, %v887
      %v917 = vmul.f32 %v757, %v887
      %v918 = vmul.f32 %v758, %v888
      %v919 = vmul.f32 %v759, %v888
      %v920 = vmul.f32 %v760, %v889
      %v921 = vmul.f32 %v761, %v889
      %v922 = vld [vmem:[%s3] sm:$0x3]
      %v924 = vlaneseq
      %v925 = vshrl.u32 %v924, 7
      %v926 = vsub.s32 0, %v925
      %v927 = vrot.slane %v922, %v926
      %v928 = vlaneseq
      %v929 = vshrl.u32 %v928, 7
      %v930 = vsub.s32 1, %v929
      %v931 = vrot.slane %v922, %v930
      %v934 = vmul.f32 %v890, %v927
      %v935 = vmul.f32 %v891, %v931
      %v936 = vmul.f32 %v892, %v927
      %v937 = vmul.f32 %v893, %v931
      %v938 = vmul.f32 %v894, %v927
      %v939 = vmul.f32 %v895, %v931
      %v940 = vmul.f32 %v896, %v927
      %v941 = vmul.f32 %v897, %v931
      %v942 = vmul.f32 %v898, %v927
      %v943 = vmul.f32 %v899, %v931
      %v944 = vmul.f32 %v900, %v927
      %v945 = vmul.f32 %v901, %v931
      %v946 = vmul.f32 %v902, %v927
      %v947 = vmul.f32 %v903, %v931
      %v948 = vmul.f32 %v904, %v927
      %v949 = vmul.f32 %v905, %v931
      %v950 = vmul.f32 %v906, %v927
      %v951 = vmul.f32 %v907, %v931
      %v952 = vmul.f32 %v908, %v927
      %v953 = vmul.f32 %v909, %v931
      %v954 = vmul.f32 %v910, %v927
      %v955 = vmul.f32 %v911, %v931
      %v956 = vmul.f32 %v912, %v927
      %v957 = vmul.f32 %v913, %v931
      %v958 = vmul.f32 %v914, %v927
      %v959 = vmul.f32 %v915, %v931
      %v960 = vmul.f32 %v916, %v927
      %v961 = vmul.f32 %v917, %v931
      %v962 = vmul.f32 %v918, %v927
      %v963 = vmul.f32 %v919, %v931
      %v964 = vmul.f32 %v920, %v927
      %v965 = vmul.f32 %v921, %v931
      %v966 = vld [vmem:[%s4] sm:$0x3]
      %v968 = vlaneseq
      %v969 = vshrl.u32 %v968, 7
      %v970 = vsub.s32 0, %v969
      %v971 = vrot.slane %v966, %v970
      %v972 = vlaneseq
      %v973 = vshrl.u32 %v972, 7
      %v974 = vsub.s32 1, %v973
      %v975 = vrot.slane %v966, %v974
      %v978 = vadd.f32 %v934, %v971
      %v979 = vadd.f32 %v935, %v975
      %v980 = vadd.f32 %v936, %v971
      %v981 = vadd.f32 %v937, %v975
      %v982 = vadd.f32 %v938, %v971
      %v983 = vadd.f32 %v939, %v975
      %v984 = vadd.f32 %v940, %v971
      %v985 = vadd.f32 %v941, %v975
      %v986 = vadd.f32 %v942, %v971
      %v987 = vadd.f32 %v943, %v975
      %v988 = vadd.f32 %v944, %v971
      %v989 = vadd.f32 %v945, %v975
      %v990 = vadd.f32 %v946, %v971
      %v991 = vadd.f32 %v947, %v975
      %v992 = vadd.f32 %v948, %v971
      %v993 = vadd.f32 %v949, %v975
      %v994 = vadd.f32 %v950, %v971
      %v995 = vadd.f32 %v951, %v975
      %v996 = vadd.f32 %v952, %v971
      %v997 = vadd.f32 %v953, %v975
      %v998 = vadd.f32 %v954, %v971
      %v999 = vadd.f32 %v955, %v975
      %v1000 = vadd.f32 %v956, %v971
      %v1001 = vadd.f32 %v957, %v975
      %v1002 = vadd.f32 %v958, %v971
      %v1003 = vadd.f32 %v959, %v975
      %v1004 = vadd.f32 %v960, %v971
      %v1005 = vadd.f32 %v961, %v975
      %v1006 = vadd.f32 %v962, %v971
      %v1007 = vadd.f32 %v963, %v975
      %v1008 = vadd.f32 %v964, %v971
      %v1009 = vadd.f32 %v965, %v975
      %v1010 = vpack.c.bf16 %v980, %v978
      %v1011 = vpack.c.bf16 %v981, %v979
      %v1012 = vpack.c.bf16 %v984, %v982
      %v1013 = vpack.c.bf16 %v985, %v983
      %v1014 = vpack.c.bf16 %v988, %v986
      %v1015 = vpack.c.bf16 %v989, %v987
      %v1016 = vpack.c.bf16 %v992, %v990
      %v1017 = vpack.c.bf16 %v993, %v991
      %v1018 = vpack.c.bf16 %v996, %v994
      %v1019 = vpack.c.bf16 %v997, %v995
      %v1020 = vpack.c.bf16 %v1000, %v998
      %v1021 = vpack.c.bf16 %v1001, %v999
      %v1022 = vpack.c.bf16 %v1004, %v1002
      %v1023 = vpack.c.bf16 %v1005, %v1003
      %v1024 = vpack.c.bf16 %v1008, %v1006
      %v1025 = vpack.c.bf16 %v1009, %v1007
      %v1026 = vld [vmem:[%s5] sm:$0xf]
      %v1027 = vld [vmem:[%s5 + $0x4] sm:$0xf]
      %v1028 = vld [vmem:[%s5 + $0x8] sm:$0xf]
      %v1029 = vld [vmem:[%s5 + $0xc] sm:$0xf]
      %v1030 = vld [vmem:[%s5 + $0x10] sm:$0xf]
      %v1031 = vld [vmem:[%s5 + $0x14] sm:$0xf]
      %v1032 = vld [vmem:[%s5 + $0x18] sm:$0xf]
      %v1033 = vld [vmem:[%s5 + $0x1c] sm:$0xf]
      %v1034 = vld [vmem:[%s5 + $0x20] sm:$0xf]
      %v1035 = vld [vmem:[%s5 + $0x24] sm:$0xf]
      %v1036 = vld [vmem:[%s5 + $0x28] sm:$0xf]
      %v1037 = vld [vmem:[%s5 + $0x2c] sm:$0xf]
      %v1038 = vld [vmem:[%s5 + $0x30] sm:$0xf]
      %v1039 = vld [vmem:[%s5 + $0x34] sm:$0xf]
      %v1040 = vld [vmem:[%s5 + $0x38] sm:$0xf]
      %v1041 = vld [vmem:[%s5 + $0x3c] sm:$0xf]
      %v1042 = vld [vmem:[%s5 + $0x40] sm:$0xf]
      %v1043 = vld [vmem:[%s5 + $0x44] sm:$0xf]
      %v1044 = vld [vmem:[%s5 + $0x48] sm:$0xf]
      %v1045 = vld [vmem:[%s5 + $0x4c] sm:$0xf]
      %v1046 = vld [vmem:[%s5 + $0x50] sm:$0xf]
      %v1047 = vld [vmem:[%s5 + $0x54] sm:$0xf]
      %v1048 = vld [vmem:[%s5 + $0x58] sm:$0xf]
      %v1049 = vld [vmem:[%s5 + $0x5c] sm:$0xf]
      %v1050 = vld [vmem:[%s5 + $0x60] sm:$0xf]
      %v1051 = vld [vmem:[%s5 + $0x64] sm:$0xf]
      %v1052 = vld [vmem:[%s5 + $0x68] sm:$0xf]
      %v1053 = vld [vmem:[%s5 + $0x6c] sm:$0xf]
      %v1054 = vld [vmem:[%s5 + $0x70] sm:$0xf]
      %v1055 = vld [vmem:[%s5 + $0x74] sm:$0xf]
      %v1056 = vld [vmem:[%s5 + $0x78] sm:$0xf]
      %v1057 = vld [vmem:[%s5 + $0x7c] sm:$0xf]
      %v1058 = vld [vmem:[%s6] sm:$0x1]
      %v1060 = vlaneseq
      %v1061 = vshrl.u32 %v1060, 7
      %v1062 = vsub.s32 0, %v1061
      %v1063 = vrot.slane %v1058, %v1062
      %v1097 = vunpack.c.l.b16 %v1026
      %v1098 = vunpack.c.l.b16 %v1027
      %v1099 = vunpack.c.l.b16 %v1028
      %v1100 = vunpack.c.l.b16 %v1029
      %v1101 = vunpack.c.l.b16 %v1030
      %v1102 = vunpack.c.l.b16 %v1031
      %v1103 = vunpack.c.l.b16 %v1032
      %v1104 = vunpack.c.l.b16 %v1033
      %v1105 = vunpack.c.l.b16 %v1034
      %v1106 = vunpack.c.l.b16 %v1035
      %v1107 = vunpack.c.l.b16 %v1036
      %v1108 = vunpack.c.l.b16 %v1037
      %v1109 = vunpack.c.l.b16 %v1038
      %v1110 = vunpack.c.l.b16 %v1039
      %v1111 = vunpack.c.l.b16 %v1040
      %v1112 = vunpack.c.l.b16 %v1041
      %v1113 = vunpack.c.l.b16 %v1042
      %v1114 = vunpack.c.l.b16 %v1043
      %v1115 = vunpack.c.l.b16 %v1044
      %v1116 = vunpack.c.l.b16 %v1045
      %v1117 = vunpack.c.l.b16 %v1046
      %v1118 = vunpack.c.l.b16 %v1047
      %v1119 = vunpack.c.l.b16 %v1048
      %v1120 = vunpack.c.l.b16 %v1049
      %v1121 = vunpack.c.l.b16 %v1050
      %v1122 = vunpack.c.l.b16 %v1051
      %v1123 = vunpack.c.l.b16 %v1052
      %v1124 = vunpack.c.l.b16 %v1053
      %v1125 = vunpack.c.l.b16 %v1054
      %v1126 = vunpack.c.l.b16 %v1055
      %v1127 = vunpack.c.l.b16 %v1056
      %v1128 = vunpack.c.l.b16 %v1057
      %v1129 = vpack.c.b16 %v1098, %v1097
      %v1130 = vpack.c.b16 %v1100, %v1099
      %v1131 = vpack.c.b16 %v1102, %v1101
      %v1132 = vpack.c.b16 %v1104, %v1103
      %v1133 = vpack.c.b16 %v1106, %v1105
      %v1134 = vpack.c.b16 %v1108, %v1107
      %v1135 = vpack.c.b16 %v1110, %v1109
      %v1136 = vpack.c.b16 %v1112, %v1111
      %v1137 = vpack.c.b16 %v1114, %v1113
      %v1138 = vpack.c.b16 %v1116, %v1115
      %v1139 = vpack.c.b16 %v1118, %v1117
      %v1140 = vpack.c.b16 %v1120, %v1119
      %v1141 = vpack.c.b16 %v1122, %v1121
      %v1142 = vpack.c.b16 %v1124, %v1123
      %v1143 = vpack.c.b16 %v1126, %v1125
      %v1144 = vpack.c.b16 %v1128, %v1127
      %1161 = vmatprep.subr.bf16.mxu0 0
      %1162 = vmatpush1.bf16.msra.mxu0 %v1129
      %1163 = vmatprep.subr.bf16.mxu0 0
      %1164 = vmatpush1.bf16.msra.mxu0 %v1130
      %1165 = vmatprep.subr.bf16.mxu0 0
      %1166 = vmatpush1.bf16.msra.mxu0 %v1131
      %1167 = vmatprep.subr.bf16.mxu0 0
      %1168 = vmatpush1.bf16.msra.mxu0 %v1132
      %1169 = vmatprep.subr.bf16.mxu0 0
      %1170 = vmatpush1.bf16.msra.mxu0 %v1133
      %1171 = vmatprep.subr.bf16.mxu0 0
      %1172 = vmatpush1.bf16.msra.mxu0 %v1134
      %1173 = vmatprep.subr.bf16.mxu0 0
      %1174 = vmatpush1.bf16.msra.mxu0 %v1135
      %1175 = vmatprep.subr.bf16.mxu0 0
      %1176 = vmatpush1.bf16.msra.mxu0 %v1136
      %1177 = vmatprep.subr.bf16.mxu0 0
      %1178 = vmatpush1.bf16.msra.mxu0 %v1137
      %1179 = vmatprep.subr.bf16.mxu0 0
      %1180 = vmatpush1.bf16.msra.mxu0 %v1138
      %1181 = vmatprep.subr.bf16.mxu0 0
      %1182 = vmatpush1.bf16.msra.mxu0 %v1139
      %1183 = vmatprep.subr.bf16.mxu0 0
      %1184 = vmatpush1.bf16.msra.mxu0 %v1140
      %1185 = vmatprep.subr.bf16.mxu0 0
      %1186 = vmatpush1.bf16.msra.mxu0 %v1141
      %1187 = vmatprep.subr.bf16.mxu0 0
      %1188 = vmatpush1.bf16.msra.mxu0 %v1142
      %1189 = vmatprep.subr.bf16.mxu0 0
      %1190 = vmatpush1.bf16.msra.mxu0 %v1143
      %1191 = vmatprep.subr.bf16.mxu0 0
      %1192 = vmatpush1.bf16.msra.mxu0 %v1144
      %1193 = vmatprep.mubr.bf16.mxu0 %v1011
      %1194 = vmatmul.mubr.bf16.gmra.mrb[0].mxu0 %v1010
      %v1195 = vpop.f32.mrb[0].mxu0
      %v1196 = vadd.f32 %v1063, %v1195
      %v1197 = vpop.f32.mrb[0].mxu0
      %v1198 = vpop.f32.mrb[0].mxu0
      %v1199 = vadd.f32 %v1063, %v1198
      %v1200 = vpop.f32.mrb[0].mxu0
      %1201 = vmatprep.mubr.bf16.mxu0 %v1013
      %1202 = vmatmul.mubr.bf16.gmra.mrb[0].mxu0 %v1012
      %v1203 = vpop.f32.mrb[0].mxu0
      %v1204 = vadd.f32 %v1063, %v1203
      %v1205 = vpop.f32.mrb[0].mxu0
      %v1206 = vpop.f32.mrb[0].mxu0
      %v1207 = vadd.f32 %v1063, %v1206
      %v1208 = vpop.f32.mrb[0].mxu0
      %1209 = vmatprep.mubr.bf16.mxu0 %v1015
      %1210 = vmatmul.mubr.bf16.gmra.mrb[0].mxu0 %v1014
      %v1211 = vpop.f32.mrb[0].mxu0
      %v1212 = vadd.f32 %v1063, %v1211
      %v1213 = vpop.f32.mrb[0].mxu0
      %v1214 = vpop.f32.mrb[0].mxu0
      %v1215 = vadd.f32 %v1063, %v1214
      %v1216 = vpop.f32.mrb[0].mxu0
      %1217 = vmatprep.mubr.bf16.mxu0 %v1017
      %1218 = vmatmul.mubr.bf16.gmra.mrb[0].mxu0 %v1016
      %v1219 = vpop.f32.mrb[0].mxu0
      %v1220 = vadd.f32 %v1063, %v1219
      %v1221 = vpop.f32.mrb[0].mxu0
      %v1222 = vpop.f32.mrb[0].mxu0
      %v1223 = vadd.f32 %v1063, %v1222
      %v1224 = vpop.f32.mrb[0].mxu0
      %1225 = vmatprep.mubr.bf16.mxu0 %v1019
      %1226 = vmatmul.mubr.bf16.gmra.mrb[0].mxu0 %v1018
      %v1227 = vpop.f32.mrb[0].mxu0
      %v1228 = vadd.f32 %v1063, %v1227
      %v1229 = vpop.f32.mrb[0].mxu0
      %v1230 = vpop.f32.mrb[0].mxu0
      %v1231 = vadd.f32 %v1063, %v1230
      %v1232 = vpop.f32.mrb[0].mxu0
      %1233 = vmatprep.mubr.bf16.mxu0 %v1021
      %1234 = vmatmul.mubr.bf16.gmra.mrb[0].mxu0 %v1020
      %v1235 = vpop.f32.mrb[0].mxu0
      %v1236 = vadd.f32 %v1063, %v1235
      %v1237 = vpop.f32.mrb[0].mxu0
      %v1238 = vpop.f32.mrb[0].mxu0
      %v1239 = vadd.f32 %v1063, %v1238
      %v1240 = vpop.f32.mrb[0].mxu0
      %1241 = vmatprep.mubr.bf16.mxu0 %v1023
      %1242 = vmatmul.mubr.bf16.gmra.mrb[0].mxu0 %v1022
      %v1243 = vpop.f32.mrb[0].mxu0
      %v1244 = vadd.f32 %v1063, %v1243
      %v1245 = vpop.f32.mrb[0].mxu0
      %v1246 = vpop.f32.mrb[0].mxu0
      %v1247 = vadd.f32 %v1063, %v1246
      %v1248 = vpop.f32.mrb[0].mxu0
      %1249 = vmatprep.mubr.bf16.mxu0 %v1025
      %1250 = vmatmul.mubr.bf16.gmra.mrb[0].mxu0 %v1024
      %v1251 = vpop.f32.mrb[0].mxu0
      %v1252 = vadd.f32 %v1063, %v1251
      %v1253 = vpop.f32.mrb[0].mxu0
      %v1254 = vpop.f32.mrb[0].mxu0
      %v1255 = vadd.f32 %v1063, %v1254
      %v1256 = vpop.f32.mrb[0].mxu0
      %1257 = vdwg.mxu0
      %vm1258 = vcmask 130048
      %1259 = vst.msk [vmem:[%s280] sm:$0xff] %vm1258, %v1196
      %1260 = vst.msk [vmem:[%s280 + $0x8] sm:$0xff] %vm1258, %v1199
      %1261 = vst.msk [vmem:[%s280 + $0x10] sm:$0xff] %vm1258, %v1204
      %1262 = vst.msk [vmem:[%s280 + $0x18] sm:$0xff] %vm1258, %v1207
      %1263 = vst.msk [vmem:[%s280 + $0x20] sm:$0xff] %vm1258, %v1212
      %1264 = vst.msk [vmem:[%s280 + $0x28] sm:$0xff] %vm1258, %v1215
      %1265 = vst.msk [vmem:[%s280 + $0x30] sm:$0xff] %vm1258, %v1220
      %1266 = vst.msk [vmem:[%s280 + $0x38] sm:$0xff] %vm1258, %v1223
      %1267 = vst.msk [vmem:[%s280 + $0x40] sm:$0xff] %vm1258, %v1228
      %1268 = vst.msk [vmem:[%s280 + $0x48] sm:$0xff] %vm1258, %v1231
      %1269 = vst.msk [vmem:[%s280 + $0x50] sm:$0xff] %vm1258, %v1236
      %1270 = vst.msk [vmem:[%s280 + $0x58] sm:$0xff] %vm1258, %v1239
      %1271 = vst.msk [vmem:[%s280 + $0x60] sm:$0xff] %vm1258, %v1244
      %1272 = vst.msk [vmem:[%s280 + $0x68] sm:$0xff] %vm1258, %v1247
      %1273 = vst.msk [vmem:[%s280 + $0x70] sm:$0xff] %vm1258, %v1252
      %1274 = vst.msk [vmem:[%s280 + $0x78] sm:$0xff] %vm1258, %v1255
      %s1275 = smul.u32 16, %s18
      %p1276 = scmp.lt.s32.totalorder %s1275, 31
      %s1277 = scalar_select %p1276, %s1275, 31
      %s1278 = smul.addr %s1277, 8
      %s1279 = scalar_lea.vmem %s7, %s1278
      // Predicated region
      $region49: #{prediction_head.1} parent=47 // pred_check
        %p1280 = pneg %p188
      $region50: #{prediction_head.1} parent=47 // pred_check_branch
        %1282 = sbr.rel (%p1280) target = $region52
      $region51: #{prediction_head.1} parent=47 // pred_region
        %s1283 = smul.u32 16, %s18
      $region52: #{prediction_head.1} parent=47 // pred_fallthru
        _
    $region48: #{prediction_head.1} parent=5 // pred_fallthru
      _
    %p1284 = scmp.le.s32.totalorder 2, %s13
    // Predicated region
    $region53: #{prediction_head.1} parent=5 // pred_check
      %p1285 = pneg %p1284
    $region54: #{prediction_head.1} parent=5 // pred_check_branch
      %1287 = sbr.rel (%p1285) target = $region56
    $region55: #{prediction_head.1} parent=5 // pred_region
      %s1288 = ssub.s32 %s13, 2
      // Predicated region
      $region57: #{prediction_head.1} parent=55 // pred_check
        %p1289 = pneg %p194
      $region58: #{prediction_head.1} parent=55 // pred_check_branch
        %1291 = sbr.rel (%p1289) target = $region60
      $region59: #{prediction_head.1} parent=55 // pred_region
        %s1292 = smul.u32 16, %s19
        %p1293 = scmp.lt.s32.totalorder %s1292, 31
        %s1294 = scalar_select %p1293, %s1292, 31
        %s1295 = smul.addr %s1294, 8
        %s1296 = scalar_lea.vmem %s7, %s1295
      $region60: #{prediction_head.1} parent=55 // pred_fallthru
        _
    $region56: #{prediction_head.1} parent=5 // pred_fallthru
      _
  $region6: #{prediction_head.1} parent=0 // loop_footer
    %s17 = sadd.s32 1, %s13
  $region7: #{prediction_head.1} parent=0 // loop_footer_branch
    %12 = sbr.rel target = $region3
  $region8: #{prediction_head.1} parent=0 // loop_exit
    _

</llo_original>
